<compile_context>
chip_gen: v6e
topology: v6e:2x2x1
jax: 0.10.0
libtpu: 0.0.40
codegen_flags: <defaults>
</compile_context>

<pallas_src>
import functools

import jax
import jax.numpy as jnp
from jax.experimental import pallas as pl
from jax.experimental.pallas import tpu as pltpu


def _round_up(x, m):
    return ((x + m - 1) // m) * m


def _apply_act(z, act):
    if act == "tanh":
        return jnp.tanh(z)
    elif act == "sigmoid":
        return jax.nn.sigmoid(z)
    else:
        raise Exception("Not Implemented")


def _mlp_kernel(x_ref, w0_ref, wpack_ref, bpack_ref, o_ref, *,
                n_layers, out_dim, final_act):
    """Fused feature-major MLP on one batch tile.

    x_ref:     (TB, d0)          bf16  batch-major input tile (torch layout)
    w0_ref:    (P, d0)           bf16  layer-0 weight, rows zero-padded to P
    wpack_ref: (max(L-1,1),P,P)  bf16  layers 1..L-1 weights, zero-padded
    bpack_ref: (L, P, 1)         f32   biases, zero-padded
    o_ref:     (out_dim, TB)     f32   lane-dense output tile (batch on lanes)
    """
    # Layer 0: contract the last dims of both operands -> (P, TB).  The
    # (TB, d0) -> (d0, TB) transpose is folded into the MXU op (XLU slot).
    z = jnp.einsum("od,td->ot", w0_ref[...], x_ref[...],
                   preferred_element_type=jnp.float32)

    if n_layers == 1:
        # Single-layer network: slice to real rows before bias/activation.
        z = z[:out_dim] + bpack_ref[0][:out_dim]
        o_ref[...] = _apply_act(z, final_act).astype(o_ref.dtype)
        return

    # Hidden activations stay bf16 between layers (MXU inputs are bf16 anyway).
    h = _apply_act(z + bpack_ref[0], "tanh").astype(jnp.bfloat16)

    for l in range(1, n_layers - 1):
        z = jnp.dot(wpack_ref[l - 1], h, preferred_element_type=jnp.float32)
        h = _apply_act(z + bpack_ref[l], "tanh").astype(jnp.bfloat16)

    # Final layer: only out_dim rows are real; slice before bias/activation so
    # the VPU/EUP skip the dead rows.  MXU cost is unchanged (it pads anyway).
    z = jnp.dot(wpack_ref[n_layers - 2], h, preferred_element_type=jnp.float32)
    z = z[:out_dim] + bpack_ref[n_layers - 1][:out_dim]
    o_ref[...] = _apply_act(z, final_act).astype(o_ref.dtype)


def pack_params(ws, bs):
    """One-time conversion of PyTorch-layout params to the kernel layout.

    Feature-major compute uses the native torch (out, in) weight layout, so no
    transposes are needed; weights are zero-padded to a common square size P
    and stacked, biases are stacked as (L, P, 1) columns.  Do this ONCE.
    """
    n_layers = len(ws)
    d0 = int(ws[0].shape[1])
    out_dim = int(ws[-1].shape[0])
    P = max(int(w.shape[0]) for w in ws)        # covers all hidden/output dims

    w0 = jnp.zeros((P, d0), jnp.float32)
    w0 = w0.at[: ws[0].shape[0], :].set(jnp.asarray(ws[0], jnp.float32))
    w0 = w0.astype(jnp.bfloat16)

    n_pack = max(n_layers - 1, 1)
    wpack = jnp.zeros((n_pack, P, P), jnp.float32)
    for l in range(1, n_layers):
        o_l, i_l = ws[l].shape
        wpack = wpack.at[l - 1, :o_l, :i_l].set(jnp.asarray(ws[l], jnp.float32))
    wpack = wpack.astype(jnp.bfloat16)

    bpack = jnp.zeros((n_layers, P, 1), jnp.float32)
    for l in range(n_layers):
        bpack = bpack.at[l, : bs[l].shape[0], 0].set(
            jnp.asarray(bs[l], jnp.float32))

    # Keep unpadded f32 copies for the small-batch (pure-jnp) fast path.
    ws_f32 = [jnp.asarray(w, jnp.float32) for w in ws]
    bs_f32 = [jnp.asarray(b, jnp.float32) for b in bs]

    return dict(w0=w0, wpack=wpack, bpack=bpack, ws=ws_f32, bs=bs_f32,
                n_layers=n_layers, d0=d0, out_dim=out_dim, P=P)


def _jnp_forward(x, ws, bs, final_act):
    """Plain fused-XLA path for tiny batches (no pad/launch overhead)."""
    h = jnp.asarray(x, jnp.float32)
    n = len(ws)
    for i, (w, b) in enumerate(zip(ws, bs)):
        h = h @ w.T + b
        h = jnp.tanh(h) if i < n - 1 else _apply_act(h, final_act)
    if h.shape[-1] == 1:
        h = jnp.squeeze(h, axis=-1)
    return h


def tanh_network_forward(x, packed, final_act="tanh", batch_tile=8192,
                         small_batch_threshold=512, force_pallas=False):
    """Pallas forward matching TanhNetwork.forward (incl. .squeeze(-1))."""
    n_layers = packed["n_layers"]
    d0 = packed["d0"]
    out_dim = packed["out_dim"]
    P = packed["P"]
    n_pack = packed["wpack"].shape[0]

    batch = x.shape[0]
    assert x.shape[1] == d0

    # Small-batch fast path: padding to 128 lanes + launch overhead dominates.
    if batch < small_batch_threshold and not force_pallas:
        return _jnp_forward(x, packed["ws"], packed["bs"], final_act)

    # Lane-dense batch tile (multiple of 128), large to amortize grid overhead.
    TB = min(batch_tile, _round_up(batch, 128))
    # v7x has 2 TensorCores and the batch axis is "parallel": make sure the
    # grid has at least 2 tiles whenever the batch is big enough to split.
    if _round_up(batch, TB) == TB and batch > 128:
        TB = _round_up((batch + 1) // 2, 128)
    batch_p = _round_up(batch, TB)
    grid = (batch_p // TB,)

    # bf16 x halves the dominant HBM traffic; no wrapper-side transpose pass.
    # Padding (only when needed) is fused with the cast by XLA; padded rows are
    # zeros and the corresponding output columns are sliced off below.
    x_bf = jnp.asarray(x).astype(jnp.bfloat16)
    if batch_p != batch:
        x_bf = jnp.pad(x_bf, ((0, batch_p - batch), (0, 0)))

    kernel = functools.partial(_mlp_kernel, n_layers=n_layers,
                               out_dim=out_dim, final_act=final_act)

    y = pl.pallas_call(
        kernel,
        out_shape=jax.ShapeDtypeStruct((out_dim, batch_p), jnp.float32),
        grid=grid,
        in_specs=[
            pl.BlockSpec((TB, d0), lambda i: (i, 0)),              # pipelined x
            pl.BlockSpec((P, d0), lambda i: (0, 0)),               # resident
            pl.BlockSpec((n_pack, P, P), lambda i: (0, 0, 0)),     # resident
            pl.BlockSpec((n_layers, P, 1), lambda i: (0, 0, 0)),   # resident
        ],
        out_specs=pl.BlockSpec((out_dim, TB), lambda i: (0, i)),   # lane-dense
        compiler_params=pltpu.CompilerParams(
            dimension_semantics=("parallel",),
            vmem_limit_bytes=48 * 1024 * 1024,
        ),
    )(x_bf, packed["w0"], packed["wpack"], packed["bpack"])

    y = y[:, :batch]
    if out_dim == 1:
        return y[0]            # torch .squeeze(-1): (batch,)
    return y.T                 # (batch, out_dim); squeeze is a no-op


def init_params(key, dims):
    """Deterministic PyTorch-style init: U(-1/sqrt(fan_in), 1/sqrt(fan_in))."""
    ws, bs = [], []
    for i in range(len(dims) - 1):
        fan_in, fan_out = dims[i], dims[i + 1]
        key, kw, kb = jax.random.split(key, 3)
        bound = 1.0 / jnp.sqrt(float(fan_in))
        ws.append(jax.random.uniform(kw, (fan_out, fan_in), jnp.float32,
                                     -bound, bound))
        bs.append(jax.random.uniform(kb, (fan_out,), jnp.float32,
                                     -bound, bound))
    return ws, bs


def reference_forward_f32(x, ws, bs, final_act="tanh"):
    """Pure f32 reference (torch semantics)."""
    h = jnp.asarray(x, jnp.float32)
    n = len(ws)
    for i, (w, b) in enumerate(zip(ws, bs)):
        h = h @ jnp.asarray(w, jnp.float32).T + jnp.asarray(b, jnp.float32)
        h = jnp.tanh(h) if i < n - 1 else _apply_act(h, final_act)
    if h.shape[-1] == 1:
        h = jnp.squeeze(h, axis=-1)
    return h


def reference_forward_bf16(x, ws, bs, final_act="tanh"):
    """Reference matching the kernel numerics: bf16 operands, f32 accumulate,
    bias add + activations in f32, bf16 hidden activations."""
    h = jnp.asarray(x, jnp.float32).astype(jnp.bfloat16)
    n = len(ws)
    for i, (w, b) in enumerate(zip(ws, bs)):
        wb = jnp.asarray(w, jnp.float32).astype(jnp.bfloat16)
        z = jnp.dot(h, wb.T, preferred_element_type=jnp.float32)
        z = z + jnp.asarray(b, jnp.float32)
        if i < n - 1:
            h = jnp.tanh(z).astype(jnp.bfloat16)
        else:
            h = _apply_act(z, final_act)
    if h.shape[-1] == 1:
        h = jnp.squeeze(h, axis=-1)
    return h


if __name__ == "__main__":
    dims = [8, 32, 32, 1]          # TanhNetwork(dims=[8, 32, 32, 1])
    final_act = "tanh"

    key = jax.random.PRNGKey(0)
    key, kx1, kx2 = jax.random.split(key, 3)

    ws, bs = init_params(key, dims)
    packed = pack_params(ws, bs)   # one-time packing, hoisted out of forward

    # 1) Small batch, forced through the Pallas kernel (single 128-wide tile).
    batch = 8
    x = jax.random.normal(kx1, (batch, dims[0]), jnp.float32)
    y = jax.block_until_ready(
        tanh_network_forward(x, packed, final_act=final_act, force_pallas=True))
    y_bf = reference_forward_bf16(x, ws, bs, final_act=final_act)
    y_f32 = reference_forward_f32(x, ws, bs, final_act=final_act)
    assert y.shape == (batch,), y.shape
    assert jnp.allclose(y, y_bf, atol=2e-3, rtol=2e-3), (y, y_bf)
    assert jnp.allclose(y, y_f32, atol=5e-2, rtol=0.0), (y, y_f32)

    # 2) Ragged batch exercising the 2-tile (v7x megacore) split + padding.
    batch2 = 384
    x2 = jax.random.normal(kx2, (batch2, dims[0]), jnp.float32)
    y2 = jax.block_until_ready(
        tanh_network_forward(x2, packed, final_act=final_act, force_pallas=True))
    y2_bf = reference_forward_bf16(x2, ws, bs, final_act=final_act)
    assert y2.shape == (batch2,), y2.shape
    assert jnp.allclose(y2, y2_bf, atol=2e-3, rtol=2e-3), (y2, y2_bf)

    # 3) Small-batch fast path (pure jnp) matches the f32 reference.
    y_fast = jax.block_until_ready(
        tanh_network_forward(x, packed, final_act=final_act))
    assert jnp.allclose(y_fast, y_f32, atol=1e-5, rtol=1e-5), (y_fast, y_f32)

    print("KERNEL_OK")
</pallas_src>

<mosaic_0001>
module attributes {stable_mosaic.version = 11 : i64} {
  func.func @_mlp_kernel(%arg0: i32, %arg1: memref<128x8xbf16, #tpu.memory_space<vmem>>, %arg2: memref<32x8xbf16, #tpu.memory_space<vmem>>, %arg3: memref<2x32x32xbf16, #tpu.memory_space<vmem>>, %arg4: memref<3x32x1xf32, #tpu.memory_space<vmem>>, %arg5: memref<1x128xf32, #tpu.memory_space<vmem>>) attributes {dimension_semantics = [#tpu.dimension_semantics<parallel>], iteration_bounds = array<i64: 1>, scalar_prefetch = 0 : i64, scratch_operands = 0 : i64, tpu.core_type = #tpu.core_type<tc>, window_params = [{transform_indices = @transform_0, window_bounds = array<i64: 128, 8>}, {pipeline_mode = #tpu.pipeline_mode<synchronous>, transform_indices = @transform_1, window_bounds = array<i64: 32, 8>}, {pipeline_mode = #tpu.pipeline_mode<synchronous>, transform_indices = @transform_2, window_bounds = array<i64: 2, 32, 32>}, {pipeline_mode = #tpu.pipeline_mode<synchronous>, transform_indices = @transform_3, window_bounds = array<i64: 3, 32, 1>}, {transform_indices = @transform_4, window_bounds = array<i64: 1, 128>}]} {
    %c0 = arith.constant 0 : index
    %c0_0 = arith.constant 0 : index
    %0 = vector.load %arg2[%c0, %c0_0] : memref<32x8xbf16, #tpu.memory_space<vmem>>, vector<32x8xbf16>
    %c0_1 = arith.constant 0 : index
    %c0_2 = arith.constant 0 : index
    %1 = vector.load %arg1[%c0_1, %c0_2] : memref<128x8xbf16, #tpu.memory_space<vmem>>, vector<128x8xbf16>
    "tpu.trace_start"() <{level = 10 : i32, message = "od,td->ot"}> : () -> ()
    %cst = arith.constant dense<0.000000e+00> : vector<32x128xf32>
    %2 = tpu.matmul %0, %1, %cst {dimension_numbers = #tpu.dot_dimension_numbers<[1], [1], [0], [0], [0, 0, 1, 0], [], []>} : vector<32x8xbf16>, vector<128x8xbf16>, vector<32x128xf32> -> vector<32x128xf32>
    "tpu.trace_stop"() : () -> ()
    %c0_3 = arith.constant 0 : index
    %c0_4 = arith.constant 0 : index
    %c0_5 = arith.constant 0 : index
    %3 = vector.load %arg4[%c0_3, %c0_4, %c0_5] : memref<3x32x1xf32, #tpu.memory_space<vmem>>, vector<1x32x1xf32>
    %4 = vector.shape_cast %3 : vector<1x32x1xf32> to vector<32x1xf32>
    %5 = vector.broadcast %4 : vector<32x1xf32> to vector<32x128xf32>
    %6 = arith.addf %2, %5 : vector<32x128xf32>
    %7 = math.tanh %6 : vector<32x128xf32>
    %8 = arith.truncf %7 : vector<32x128xf32> to vector<32x128xbf16>
    %c0_6 = arith.constant 0 : index
    %c0_7 = arith.constant 0 : index
    %c0_8 = arith.constant 0 : index
    %9 = vector.load %arg3[%c0_6, %c0_7, %c0_8] : memref<2x32x32xbf16, #tpu.memory_space<vmem>>, vector<1x32x32xbf16>
    %10 = vector.shape_cast %9 : vector<1x32x32xbf16> to vector<32x32xbf16>
    %cst_9 = arith.constant dense<0.000000e+00> : vector<32x128xf32>
    %11 = tpu.matmul %10, %8, %cst_9 {dimension_numbers = #tpu.dot_dimension_numbers<[1], [0], [0], [1], [0, 0, 1, 1], [], []>} : vector<32x32xbf16>, vector<32x128xbf16>, vector<32x128xf32> -> vector<32x128xf32>
    %c1 = arith.constant 1 : index
    %c0_10 = arith.constant 0 : index
    %c0_11 = arith.constant 0 : index
    %12 = vector.load %arg4[%c1, %c0_10, %c0_11] : memref<3x32x1xf32, #tpu.memory_space<vmem>>, vector<1x32x1xf32>
    %13 = vector.shape_cast %12 : vector<1x32x1xf32> to vector<32x1xf32>
    %14 = vector.broadcast %13 : vector<32x1xf32> to vector<32x128xf32>
    %15 = arith.addf %11, %14 : vector<32x128xf32>
    %16 = math.tanh %15 : vector<32x128xf32>
    %17 = arith.truncf %16 : vector<32x128xf32> to vector<32x128xbf16>
    %c1_12 = arith.constant 1 : index
    %c0_13 = arith.constant 0 : index
    %c0_14 = arith.constant 0 : index
    %18 = vector.load %arg3[%c1_12, %c0_13, %c0_14] : memref<2x32x32xbf16, #tpu.memory_space<vmem>>, vector<1x32x32xbf16>
    %19 = vector.shape_cast %18 : vector<1x32x32xbf16> to vector<32x32xbf16>
    %cst_15 = arith.constant dense<0.000000e+00> : vector<32x128xf32>
    %20 = tpu.matmul %19, %17, %cst_15 {dimension_numbers = #tpu.dot_dimension_numbers<[1], [0], [0], [1], [0, 0, 1, 1], [], []>} : vector<32x32xbf16>, vector<32x128xbf16>, vector<32x128xf32> -> vector<32x128xf32>
    %21 = vector.extract_strided_slice %20 {offsets = [0, 0], sizes = [1, 128], strides = [1, 1]} : vector<32x128xf32> to vector<1x128xf32>
    %c2 = arith.constant 2 : index
    %c0_16 = arith.constant 0 : index
    %c0_17 = arith.constant 0 : index
    %22 = vector.load %arg4[%c2, %c0_16, %c0_17] : memref<3x32x1xf32, #tpu.memory_space<vmem>>, vector<1x32x1xf32>
    %23 = vector.shape_cast %22 : vector<1x32x1xf32> to vector<32x1xf32>
    %24 = vector.extract_strided_slice %23 {offsets = [0, 0], sizes = [1, 1], strides = [1, 1]} : vector<32x1xf32> to vector<1x1xf32>
    %25 = vector.broadcast %24 : vector<1x1xf32> to vector<1x128xf32>
    %26 = arith.addf %21, %25 : vector<1x128xf32>
    %27 = math.tanh %26 : vector<1x128xf32>
    %c0_18 = arith.constant 0 : index
    %c0_19 = arith.constant 0 : index
    %28 = vector.load %arg5[%c0_18, %c0_19] : memref<1x128xf32, #tpu.memory_space<vmem>>, vector<1x128xf32>
    tpu.vector_store %arg5[%c0_18, %c0_19], %27 {strides = array<i32>} : memref<1x128xf32, #tpu.memory_space<vmem>>, vector<1x128xf32>,
    return
  }
  func.func @transform_0(%arg0: i32) -> (i32, i32) {
    %c0_i32 = arith.constant 0 : i32
    %c0_i32_0 = arith.constant 0 : i32
    return %arg0, %c0_i32 : i32, i32
  }
  func.func @transform_1(%arg0: i32) -> (i32, i32) {
    %c0_i32 = arith.constant 0 : i32
    %c0_i32_0 = arith.constant 0 : i32
    %c0_i32_1 = arith.constant 0 : i32
    return %c0_i32, %c0_i32_0 : i32, i32
  }
  func.func @transform_2(%arg0: i32) -> (i32, i32, i32) {
    %c0_i32 = arith.constant 0 : i32
    %c0_i32_0 = arith.constant 0 : i32
    %c0_i32_1 = arith.constant 0 : i32
    %c0_i32_2 = arith.constant 0 : i32
    return %c0_i32, %c0_i32_0, %c0_i32_1 : i32, i32, i32
  }
  func.func @transform_3(%arg0: i32) -> (i32, i32, i32) {
    %c0_i32 = arith.constant 0 : i32
    %c0_i32_0 = arith.constant 0 : i32
    %c0_i32_1 = arith.constant 0 : i32
    %c0_i32_2 = arith.constant 0 : i32
    return %c0_i32, %c0_i32_0, %c0_i32_1 : i32, i32, i32
  }
  func.func @transform_4(%arg0: i32) -> (i32, i32) {
    %c0_i32 = arith.constant 0 : i32
    %c0_i32_0 = arith.constant 0 : i32
    return %c0_i32, %arg0 : i32, i32
  }
}

</mosaic_0001>

<llo_original>
// kernel: tpu_custom_call.1
$region0: #{tpu_custom_call.1}
  #allocation0 [shape = 'u32[]', space=smem, size = 0x4, offset = 0x4, fixed_abs, tag = 'smem constant byte address 0x4 - core index']
  #allocation1 [shape = 'u32[144,128]{1,0:T(1,128)}', space=vmem, size = 0x12000, scoped, tag = 'internal scratch']
  %s0 = inlined_call_operand.vmem [shape: bf16[128,8], index: 0, kind: input, shape index: {}]
  %s1 = inlined_call_operand.vmem [shape: bf16[32,8], index: 1, kind: input, shape index: {}]
  %s2 = inlined_call_operand.vmem [shape: bf16[2,32,32], index: 2, kind: input, shape index: {}]
  %s3 = inlined_call_operand.vmem [shape: f32[3,32,1], index: 3, kind: input, shape index: {}]
  %s4 = inlined_call_operand.hbm [shape: f32[1,128], index: 4, kind: output, shape index: {}]
  %s5 = sld [smem:[#allocation0]]
  $region26: #{tpu_custom_call.1} parent=0
    _
  %s7 = ssub.s32 1, %s5
  %s8 = scalar_select 0, %s7, %s5
  $region1: #{tpu_custom_call.1} parent=0
    #allocation2 [shape = 'u8[512]{0}', space=vmem, size = 0x400, scoped, tag = 'output window, operand 0, single buffered']
    #allocation3 [shape = 's32[1]{0}', space=sflag, size = 0x4, scoped, tag = 'scoped memory for tpu_custom_call.1']
    %9 = vsyncpa [#allocation3], 0
    // Predicated region
    $region2: #{tpu_custom_call.1} parent=1 // pred_check
      _
    $region3: #{tpu_custom_call.1} parent=1 // pred_check_branch
      %11 = sbr.rel (0) target = $region5
    $region4: #{tpu_custom_call.1} parent=1 // pred_region
      _
    $region5: #{tpu_custom_call.1} parent=1 // pred_fallthru
      _
    // Predicated region
    $region6: #{tpu_custom_call.1} parent=1 // pred_check
      _
    $region7: #{tpu_custom_call.1} parent=1 // pred_check_branch
      %13 = sbr.rel (0) target = $region9
    $region8: #{tpu_custom_call.1} parent=1 // pred_region
      _
    $region9: #{tpu_custom_call.1} parent=1 // pred_fallthru
      _
    // Predicated region
    $region10: #{tpu_custom_call.1} parent=1 // pred_check
      _
    $region11: #{tpu_custom_call.1} parent=1 // pred_check_branch
      %15 = sbr.rel (0) target = $region13
    $region12: #{tpu_custom_call.1} parent=1 // pred_region
      _
    $region13: #{tpu_custom_call.1} parent=1 // pred_fallthru
      _
    // Predicated region
    $region14: #{tpu_custom_call.1} parent=1 // pred_check
      _
    $region15: #{tpu_custom_call.1} parent=1 // pred_check_branch
      %17 = sbr.rel (0) target = $region17
    $region16: #{tpu_custom_call.1} parent=1 // pred_region
      _
    $region17: #{tpu_custom_call.1} parent=1 // pred_fallthru
      _
    %v19 = vld [vmem:[%s1] sm:$0xf]
    %v20 = vld [vmem:[%s1 + $0x4] sm:$0xf]
    %v21 = vld [vmem:[%s1 + $0x8] sm:$0xf]
    %v22 = vld [vmem:[%s1 + $0xc] sm:$0xf]
    %v23 = vld [vmem:[%s0] sm:$0xf]
    %v24 = vld [vmem:[%s0 + $0x4] sm:$0xf]
    %v25 = vld [vmem:[%s0 + $0x8] sm:$0xf]
    %v26 = vld [vmem:[%s0 + $0xc] sm:$0xf]
    %v27 = vld [vmem:[%s0 + $0x10] sm:$0xf]
    %v28 = vld [vmem:[%s0 + $0x14] sm:$0xf]
    %v29 = vld [vmem:[%s0 + $0x18] sm:$0xf]
    %v30 = vld [vmem:[%s0 + $0x1c] sm:$0xf]
    %v31 = vld [vmem:[%s0 + $0x20] sm:$0xf]
    %v32 = vld [vmem:[%s0 + $0x24] sm:$0xf]
    %v33 = vld [vmem:[%s0 + $0x28] sm:$0xf]
    %v34 = vld [vmem:[%s0 + $0x2c] sm:$0xf]
    %v35 = vld [vmem:[%s0 + $0x30] sm:$0xf]
    %v36 = vld [vmem:[%s0 + $0x34] sm:$0xf]
    %v37 = vld [vmem:[%s0 + $0x38] sm:$0xf]
    %v38 = vld [vmem:[%s0 + $0x3c] sm:$0xf]
    %v39 = vld [vmem:[%s3] sm:$0xff]
    %v40 = vld [vmem:[%s3 + $0x8] sm:$0xff]
    %v41 = vld [vmem:[%s3 + $0x10] sm:$0xff]
    %v42 = vld [vmem:[%s3 + $0x18] sm:$0xff]
    %44 = vset.pattern.permute.xlu0 0
    %45 = vperm.xlu0 %44, %v39
    %v46 = vpop.permute.xlu0 %45
    %49 = vset.pattern.permute.xlu0 0
    %50 = vperm.xlu0 %49, %v40
    %v51 = vpop.permute.xlu0 %50
    %54 = vset.pattern.permute.xlu0 0
    %55 = vperm.xlu0 %54, %v41
    %v56 = vpop.permute.xlu0 %55
    %59 = vset.pattern.permute.xlu0 0
    %60 = vperm.xlu0 %59, %v42
    %v61 = vpop.permute.xlu0 %60
    %v67 = vunpack.c.l.b16 %v19
    %v68 = vunpack.c.l.b16 %v20
    %v69 = vunpack.c.l.b16 %v21
    %v70 = vunpack.c.l.b16 %v22
    %v71 = vpack.c.b16 %v68, %v67
    %v72 = vpack.c.b16 %v70, %v69
    %v89 = vunpack.c.l.b16 %v23
    %v90 = vunpack.c.l.b16 %v24
    %v91 = vunpack.c.l.b16 %v25
    %v92 = vunpack.c.l.b16 %v26
    %v93 = vunpack.c.l.b16 %v27
    %v94 = vunpack.c.l.b16 %v28
    %v95 = vunpack.c.l.b16 %v29
    %v96 = vunpack.c.l.b16 %v30
    %v97 = vunpack.c.l.b16 %v31
    %v98 = vunpack.c.l.b16 %v32
    %v99 = vunpack.c.l.b16 %v33
    %v100 = vunpack.c.l.b16 %v34
    %v101 = vunpack.c.l.b16 %v35
    %v102 = vunpack.c.l.b16 %v36
    %v103 = vunpack.c.l.b16 %v37
    %v104 = vunpack.c.l.b16 %v38
    %v105 = vpack.c.b16 %v90, %v89
    %v106 = vpack.c.b16 %v92, %v91
    %v107 = vpack.c.b16 %v94, %v93
    %v108 = vpack.c.b16 %v96, %v95
    %v109 = vpack.c.b16 %v98, %v97
    %v110 = vpack.c.b16 %v100, %v99
    %v111 = vpack.c.b16 %v102, %v101
    %v112 = vpack.c.b16 %v104, %v103
    %vm113 = vcmask 64512
    %v115 = vsel %vm113, %v71, 0
    %v118 = vsel %vm113, %v72, 0
    %v121 = vsel %vm113, %v105, 0
    %v124 = vsel %vm113, %v106, 0
    %v127 = vsel %vm113, %v107, 0
    %v130 = vsel %vm113, %v108, 0
    %v133 = vsel %vm113, %v109, 0
    %v136 = vsel %vm113, %v110, 0
    %v139 = vsel %vm113, %v111, 0
    %v142 = vsel %vm113, %v112, 0
    %144 = vmatprep.subr.bf16.mxu0 0
    %145 = vmatpush1.bf16.xpose.msra.mxu0 %v142
    %146 = vmatprep.subr.bf16.mxu0 0
    %147 = vmatpush1.bf16.xpose.msra.mxu0 %v139
    %148 = vmatprep.subr.bf16.mxu0 0
    %149 = vmatpush1.bf16.xpose.msra.mxu0 %v136
    %150 = vmatprep.subr.bf16.mxu0 0
    %151 = vmatpush1.bf16.xpose.msra.mxu0 %v133
    %152 = vmatprep.subr.bf16.mxu0 0
    %153 = vmatpush1.bf16.xpose.msra.mxu0 %v130
    %154 = vmatprep.subr.bf16.mxu0 0
    %155 = vmatpush1.bf16.xpose.msra.mxu0 %v127
    %156 = vmatprep.subr.bf16.mxu0 0
    %157 = vmatpush1.bf16.xpose.msra.mxu0 %v124
    %158 = vmatprep.subr.bf16.mxu0 0
    %159 = vmatpush1.bf16.xpose.msra.mxu0 %v121
    %160 = vmatprep.subr.bf16.mxu0 0
    %161 = vmatpush2.bf16.xpose.msra.mxu0 0
    %162 = vmatprep.subr.bf16.mxu0 0
    %163 = vmatpush2.bf16.xpose.msra.mxu0 0
    %164 = vmatprep.subr.bf16.mxu0 0
    %165 = vmatpush2.bf16.xpose.msra.mxu0 0
    %166 = vmatprep.subr.bf16.mxu0 0
    %167 = vmatpush2.bf16.xpose.msra.mxu0 0
    %168 = vmatprep.subr.bf16.mxu0 0
    %169 = vmatpush2.bf16.xpose.msra.mxu0 0
    %170 = vmatprep.subr.bf16.mxu0 0
    %171 = vmatpush2.bf16.xpose.msra.mxu0 0
    %172 = vmatprep.subr.bf16.mxu0 0
    %173 = vmatpush2.bf16.xpose.msra.mxu0 0
    %174 = vmatprep.subr.bf16.mxu0 0
    %175 = vmatpush2.bf16.xpose.msra.mxu0 0
    %176 = vmatprep.mubr.bf16.mxu0 0
    %177 = vmatmul.mubr.bf16.gmra.mxu0 %v115
    %v178 = vpop.f32.mrf.mxu0
    %v179 = vadd.f32 %v46, %v178
    %v180 = vpop.f32.mrf.mxu0
    %v181 = vpop.f32.mrf.mxu0
    %v182 = vadd.f32 %v51, %v181
    %v183 = vpop.f32.mrf.mxu0
    %184 = vmatprep.mubr.bf16.mxu0 0
    %185 = vmatmul.mubr.bf16.gmra.mxu0 %v118
    %v186 = vpop.f32.mrf.mxu0
    %v187 = vadd.f32 %v56, %v186
    %v188 = vpop.f32.mrf.mxu0
    %v189 = vpop.f32.mrf.mxu0
    %v190 = vadd.f32 %v61, %v189
    %v191 = vpop.f32.mrf.mxu0
    %192 = vdwg.mxu0
    %v193 = vtanh.pop %v179
    %v194 = vtanh.pop %v182
    %v195 = vtanh.pop %v187
    %v196 = vtanh.pop %v190
    %v197 = vpack.c.bf16 %v194, %v193
    %v198 = vpack.c.bf16 %v196, %v195
    %v199 = vld [vmem:[%s2] sm:$0xf]
    %v200 = vld [vmem:[%s2 + $0x4] sm:$0xf]
    %v201 = vld [vmem:[%s2 + $0x8] sm:$0xf]
    %v202 = vld [vmem:[%s2 + $0xc] sm:$0xf]
    %s203 = scalar_lea.vmem %s3, 32
    %v204 = vld [vmem:[%s203] sm:$0xff]
    %v205 = vld [vmem:[%s203 + $0x8] sm:$0xff]
    %v206 = vld [vmem:[%s203 + $0x10] sm:$0xff]
    %v207 = vld [vmem:[%s203 + $0x18] sm:$0xff]
    %209 = vset.pattern.permute.xlu0 0
    %210 = vperm.xlu0 %209, %v204
    %v211 = vpop.permute.xlu0 %210
    %214 = vset.pattern.permute.xlu0 0
    %215 = vperm.xlu0 %214, %v205
    %v216 = vpop.permute.xlu0 %215
    %219 = vset.pattern.permute.xlu0 0
    %220 = vperm.xlu0 %219, %v206
    %v221 = vpop.permute.xlu0 %220
    %224 = vset.pattern.permute.xlu0 0
    %225 = vperm.xlu0 %224, %v207
    %v226 = vpop.permute.xlu0 %225
    %v232 = vunpack.c.l.b16 %v199
    %v233 = vunpack.c.l.b16 %v200
    %v234 = vunpack.c.l.b16 %v201
    %v235 = vunpack.c.l.b16 %v202
    %v236 = vpack.c.b16 %v233, %v232
    %v237 = vpack.c.b16 %v235, %v234
    %vm238 = vcmask 261120
    %v240 = vsel %vm238, %v236, 0
    %v243 = vsel %vm238, %v237, 0
    %245 = vmatprep.subr.bf16.mxu0 0
    %246 = vmatpush1.bf16.msra.mxu0 0
    %247 = vmatprep.subr.bf16.mxu0 0
    %248 = vmatpush1.bf16.msra.mxu0 0
    %249 = vmatprep.subr.bf16.mxu0 0
    %250 = vmatpush1.bf16.msra.mxu0 0
    %251 = vmatprep.subr.bf16.mxu0 0
    %252 = vmatpush1.bf16.msra.mxu0 0
    %253 = vmatprep.subr.bf16.mxu0 0
    %254 = vmatpush1.bf16.msra.mxu0 0
    %255 = vmatprep.subr.bf16.mxu0 0
    %256 = vmatpush1.bf16.msra.mxu0 0
    %257 = vmatprep.subr.bf16.mxu0 0
    %258 = vmatpush1.bf16.msra.mxu0 %v198
    %259 = vmatprep.subr.bf16.mxu0 0
    %260 = vmatpush1.bf16.msra.mxu0 %v197
    %261 = vmatprep.subr.bf16.mxu0 0
    %262 = vmatpush2.bf16.msra.mxu0 0
    %263 = vmatprep.subr.bf16.mxu0 0
    %264 = vmatpush2.bf16.msra.mxu0 0
    %265 = vmatprep.subr.bf16.mxu0 0
    %266 = vmatpush2.bf16.msra.mxu0 0
    %267 = vmatprep.subr.bf16.mxu0 0
    %268 = vmatpush2.bf16.msra.mxu0 0
    %269 = vmatprep.subr.bf16.mxu0 0
    %270 = vmatpush2.bf16.msra.mxu0 0
    %271 = vmatprep.subr.bf16.mxu0 0
    %272 = vmatpush2.bf16.msra.mxu0 0
    %273 = vmatprep.subr.bf16.mxu0 0
    %274 = vmatpush2.bf16.msra.mxu0 0
    %275 = vmatprep.subr.bf16.mxu0 0
    %276 = vmatpush2.bf16.msra.mxu0 0
    %277 = vmatprep.mubr.bf16.mxu0 0
    %278 = vmatmul.mubr.bf16.gmra.mxu0 %v240
    %v279 = vpop.f32.mrf.mxu0
    %v280 = vadd.f32 %v211, %v279
    %v281 = vpop.f32.mrf.mxu0
    %v282 = vpop.f32.mrf.mxu0
    %v283 = vadd.f32 %v216, %v282
    %v284 = vpop.f32.mrf.mxu0
    %285 = vmatprep.mubr.bf16.mxu0 0
    %286 = vmatmul.mubr.bf16.gmra.mxu0 %v243
    %v287 = vpop.f32.mrf.mxu0
    %v288 = vadd.f32 %v221, %v287
    %v289 = vpop.f32.mrf.mxu0
    %v290 = vpop.f32.mrf.mxu0
    %v291 = vadd.f32 %v226, %v290
    %v292 = vpop.f32.mrf.mxu0
    %293 = vdwg.mxu0
    %v294 = vtanh.pop %v280
    %v295 = vtanh.pop %v283
    %v296 = vtanh.pop %v288
    %v297 = vtanh.pop %v291
    %v298 = vpack.c.bf16 %v295, %v294
    %v299 = vpack.c.bf16 %v297, %v296
    %s300 = scalar_lea.vmem %s2, 16
    %v301 = vld [vmem:[%s300] sm:$0xf]
    %v302 = vld [vmem:[%s300 + $0x4] sm:$0xf]
    %v303 = vld [vmem:[%s300 + $0x8] sm:$0xf]
    %v304 = vld [vmem:[%s300 + $0xc] sm:$0xf]
    %v309 = vunpack.c.l.b16 %v301
    %v310 = vunpack.c.l.b16 %v302
    %v311 = vunpack.c.l.b16 %v303
    %v312 = vunpack.c.l.b16 %v304
    %v313 = vpack.c.b16 %v310, %v309
    %v314 = vpack.c.b16 %v312, %v311
    %v316 = vsel %vm238, %v313, 0
    %v319 = vsel %vm238, %v314, 0
    %321 = vmatprep.subr.bf16.mxu0 0
    %322 = vmatpush1.bf16.msra.mxu0 0
    %323 = vmatprep.subr.bf16.mxu0 0
    %324 = vmatpush1.bf16.msra.mxu0 0
    %325 = vmatprep.subr.bf16.mxu0 0
    %326 = vmatpush1.bf16.msra.mxu0 0
    %327 = vmatprep.subr.bf16.mxu0 0
    %328 = vmatpush1.bf16.msra.mxu0 0
    %329 = vmatprep.subr.bf16.mxu0 0
    %330 = vmatpush1.bf16.msra.mxu0 0
    %331 = vmatprep.subr.bf16.mxu0 0
    %332 = vmatpush1.bf16.msra.mxu0 0
    %333 = vmatprep.subr.bf16.mxu0 0
    %334 = vmatpush1.bf16.msra.mxu0 %v299
    %335 = vmatprep.subr.bf16.mxu0 0
    %336 = vmatpush1.bf16.msra.mxu0 %v298
    %337 = vmatprep.subr.bf16.mxu0 0
    %338 = vmatpush2.bf16.msra.mxu0 0
    %339 = vmatprep.subr.bf16.mxu0 0
    %340 = vmatpush2.bf16.msra.mxu0 0
    %341 = vmatprep.subr.bf16.mxu0 0
    %342 = vmatpush2.bf16.msra.mxu0 0
    %343 = vmatprep.subr.bf16.mxu0 0
    %344 = vmatpush2.bf16.msra.mxu0 0
    %345 = vmatprep.subr.bf16.mxu0 0
    %346 = vmatpush2.bf16.msra.mxu0 0
    %347 = vmatprep.subr.bf16.mxu0 0
    %348 = vmatpush2.bf16.msra.mxu0 0
    %349 = vmatprep.subr.bf16.mxu0 0
    %350 = vmatpush2.bf16.msra.mxu0 0
    %351 = vmatprep.subr.bf16.mxu0 0
    %352 = vmatpush2.bf16.msra.mxu0 0
    %353 = vmatprep.mubr.bf16.mxu0 0
    %354 = vmatmul.mubr.bf16.gmra.mxu0 %v316
    %v355 = vpop.f32.mrf.mxu0
    %v356 = vadd.f32 0.0, %v355
    %v357 = vpop.f32.mrf.mxu0
    %v358 = vpop.f32.mrf.mxu0
    %v359 = vpop.f32.mrf.mxu0
    %360 = vmatprep.mubr.bf16.mxu0 0
    %361 = vmatmul.mubr.bf16.gmra.mxu0 %v319
    %v362 = vpop.f32.mrf.mxu0
    %v363 = vpop.f32.mrf.mxu0
    %v364 = vpop.f32.mrf.mxu0
    %v365 = vpop.f32.mrf.mxu0
    %366 = vdwg.mxu0
    %s367 = scalar_lea.vmem %s3, 64
    %v368 = vld [vmem:[%s367] sm:$0xff]
    %370 = vset.pattern.permute.xlu0 0
    %371 = vperm.xlu0 %370, %v368
    %v372 = vpop.permute.xlu0 %371
    %v374 = vadd.f32 %v356, %v372
    %v375 = vtanh.pop %v374
    %376 = vst [vmem:[#allocation2] sm:$0x1] %v375
    // Predicated region
    $region18: #{tpu_custom_call.1} parent=1 // pred_check
      _
    $region19: #{tpu_custom_call.1} parent=1 // pred_check_branch
      %378 = sbr.rel (0) target = $region21
    $region20: #{tpu_custom_call.1} parent=1 // pred_region
      %s380 = ssub.s32 16, 16
      %381 = vsyncadd [#allocation3], %s380
      %s383 = sshll.u32 [#allocation2], 4
      %s384 = int_to_ptr.vmem [resolvable:$true] %s383
      %386 = dma.vmem_to_hbm [thread:$0]  %s384, 16, %s4, [#allocation3]
    $region21: #{tpu_custom_call.1} parent=1 // pred_fallthru
      _
    // Predicated region
    $region22: #{tpu_custom_call.1} parent=1 // pred_check
      _
    $region23: #{tpu_custom_call.1} parent=1 // pred_check_branch
      %388 = sbr.rel (0) target = $region25
    $region24: #{tpu_custom_call.1} parent=1 // pred_region
      %389 = dma.done [#allocation3], 16
    $region25: #{tpu_custom_call.1} parent=1 // pred_fallthru
      _
    %390 = vsyncpa [#allocation3], 1

</llo_original>
